<compile_context>
chip_gen: v7x
topology: tpu7x:2x2x1
jax: 0.10.0
libtpu: 0.0.40
codegen_flags: <defaults>
</compile_context>

<pallas_src>
import functools

import jax
import jax.numpy as jnp
from jax.experimental import pallas as pl
from jax.experimental.pallas import tpu as pltpu

_LANE = 128     # TPU lane width (row-tile granularity)
_OUT_PAD = 8    # the 2-wide head is zero-padded to 8 output columns


# ----------------------------- kernels --------------------------------------


def _qa_ensemble_kernel(x_ref, w1_ref, b1_ref, w2_ref, b2_ref, w3p_ref, o_ref):
    """Linear(H,H) -> [Dropout=id] -> Linear(H,H//2) -> SiLU -> Linear(H//2,2,no bias)."""
    x = x_ref[...].astype(jnp.bfloat16)                                     # cast in VMEM
    h1 = jnp.dot(x, w1_ref[...], preferred_element_type=jnp.float32)       # (tm, H) f32
    h1 = h1 + b1_ref[...]
    h2 = jnp.dot(h1.astype(jnp.bfloat16), w2_ref[...],
                 preferred_element_type=jnp.float32)                        # (tm, H//2) f32
    h2 = h2 + b2_ref[...]
    h2 = h2 * jax.nn.sigmoid(h2)                                            # SiLU (EUP)
    # w3 is zero-padded to 8 columns; store the (tm, 8) result directly
    # (no epilogue transpose).  Columns 0/1 are start/end logits.
    o_ref[...] = jnp.dot(h2.astype(jnp.bfloat16), w3p_ref[...],
                         preferred_element_type=jnp.float32)                # (tm, 8) f32


def _qa_simple_kernel(x_ref, wp_ref, o_ref):
    """[Dropout=id] -> Linear(H, 2, no bias)."""
    x = x_ref[...].astype(jnp.bfloat16)
    o_ref[...] = jnp.dot(x, wp_ref[...], preferred_element_type=jnp.float32)  # (tm, 8) f32


# ----------------------------- parameter init -------------------------------


def _xavier_uniform(key, out_features, in_features, dtype=jnp.float32):
    """Matches torch.nn.init.xavier_uniform_ on a (out, in) weight."""
    bound = jnp.sqrt(6.0 / (in_features + out_features))
    return jax.random.uniform(
        key, (out_features, in_features), dtype=dtype, minval=-bound, maxval=bound
    )


def init_qa_output_params(key, hidden_size, is_ensemble):
    """Kernel-ready parameters mirroring QaOutput.__init__.

    Done ONCE at load time (outside the jitted forward): weights are
    pre-transposed to [in, out], pre-cast to bf16, and the 2-wide head is
    pre-padded to 8 output columns.  Biases stay f32.
    """
    if is_ensemble:
        k1, k2, k3 = jax.random.split(key, 3)
        h2 = hidden_size // 2
        w1 = _xavier_uniform(k1, hidden_size, hidden_size).T                 # (H, H)
        w2 = _xavier_uniform(k2, h2, hidden_size).T                          # (H, H//2)
        w3 = _xavier_uniform(k3, 2, h2).T                                    # (H//2, 2)
        return {
            "w1": w1.astype(jnp.bfloat16),
            "b1": jnp.zeros((1, hidden_size), jnp.float32),
            "w2": w2.astype(jnp.bfloat16),
            "b2": jnp.zeros((1, h2), jnp.float32),
            "w3p": jnp.pad(w3, ((0, 0), (0, _OUT_PAD - 2))).astype(jnp.bfloat16),
        }
    w = _xavier_uniform(key, 2, hidden_size).T                               # (H, 2)
    return {"wp": jnp.pad(w, ((0, 0), (0, _OUT_PAD - 2))).astype(jnp.bfloat16)}


# ----------------------------- spec / limit helpers --------------------------


def _spec(block_shape, index_map, buffers=None):
    """BlockSpec with an optional buffer-count request (falls back gracefully)."""
    if buffers is not None:
        try:
            return pl.BlockSpec(block_shape, index_map,
                                pipeline_mode=pl.Buffered(buffers))
        except Exception:  # pipeline_mode / Buffered unsupported -> default buffering
            pass
    return pl.BlockSpec(block_shape, index_map)


@functools.lru_cache(maxsize=None)
def _vmem_limit_bytes():
    """Generation-aware scoped-VMEM limit with headroom.

    ~3/4 of per-core physical VMEM: ≈48 MiB on v7x (64 MiB physical),
    ≈96 MiB on v5e/v6e (128 MiB physical).  Conservative fallback if the
    query is unavailable.
    """
    try:
        cap = int(pltpu.get_tpu_info().vmem_capacity_bytes)
    except Exception:
        return 48 * 1024 * 1024
    return max(32 * 1024 * 1024, min((cap * 3) // 4, 96 * 1024 * 1024))


# ----------------------------- wrapper ---------------------------------------


@functools.partial(jax.jit, static_argnames=("is_ensemble", "tile_m"))
def qa_output_forward(hidden_states, params, *, is_ensemble, tile_m=None):
    """Forward pass of QaOutput.

    hidden_states: [B, S, H] (f32 or bf16)
    returns: {'start_logits': [B, S], 'end_logits': [B, S]}
    """
    B, S, H = hidden_states.shape
    M = B * S
    x2d = hidden_states.reshape(M, H)   # free view; bf16 cast happens in-kernel

    # Larger row tiles amortize the ~0.35us/step overhead; the simple head is
    # purely HBM-bound so it gets the biggest tile.  Cap near M for tiny inputs.
    if tile_m is None:
        tile_m = 1024 if is_ensemble else 2048
    tm = max(_LANE, (int(tile_m) // _LANE) * _LANE)
    tm = min(tm, pl.cdiv(M, _LANE) * _LANE)

    grid = (pl.cdiv(M, tm),)            # ragged last tile handled by Pallas (no jnp.pad)

    x_spec = pl.BlockSpec((tm, H), lambda i: (i, 0))
    out_spec = pl.BlockSpec((tm, _OUT_PAD), lambda i: (i, 0))
    out_shape = jax.ShapeDtypeStruct((M, _OUT_PAD), jnp.float32)
    cparams = pltpu.CompilerParams(
        dimension_semantics=("parallel",),
        vmem_limit_bytes=_vmem_limit_bytes(),
    )

    def _w(shape):  # grid-invariant weight/bias: whole-array block, single buffer
        return _spec(shape, lambda i: (0,) * len(shape), buffers=1)

    x_bytes = M * H * x2d.dtype.itemsize

    if is_ensemble:
        H2 = H // 2
        cost = pl.CostEstimate(
            flops=2 * M * H * H + 2 * M * H * H2 + 2 * M * H2 * _OUT_PAD,
            transcendentals=M * H2,
            bytes_accessed=(x_bytes + (H * H + H * H2 + H2 * _OUT_PAD) * 2
                            + (H + H2) * 4 + M * _OUT_PAD * 4),
        )
        slab = pl.pallas_call(
            _qa_ensemble_kernel,
            out_shape=out_shape,
            grid=grid,
            in_specs=[
                x_spec,
                _w((H, H)),          # w1
                _w((1, H)),          # b1
                _w((H, H2)),         # w2
                _w((1, H2)),         # b2
                _w((H2, _OUT_PAD)),  # w3 (padded to 8 cols)
            ],
            out_specs=out_spec,
            compiler_params=cparams,
            cost_estimate=cost,
        )(x2d, params["w1"], params["b1"], params["w2"], params["b2"], params["w3p"])
    else:
        cost = pl.CostEstimate(
            flops=2 * M * H * _OUT_PAD,
            transcendentals=0,
            bytes_accessed=x_bytes + H * _OUT_PAD * 2 + M * _OUT_PAD * 4,
        )
        slab = pl.pallas_call(
            _qa_simple_kernel,
            out_shape=out_shape,
            grid=grid,
            in_specs=[x_spec, _w((H, _OUT_PAD))],
            out_specs=out_spec,
            compiler_params=cparams,
            cost_estimate=cost,
        )(x2d, params["wp"])

    start_logits = slab[:, 0].reshape(B, S)
    end_logits = slab[:, 1].reshape(B, S)
    return {"start_logits": start_logits, "end_logits": end_logits}


# ------------------------- plain-JAX reference --------------------------------


def _qa_output_ref(hidden_states, params, is_ensemble):
    """Reference mirroring the kernel's bf16-operand / f32-accumulate policy."""
    x = hidden_states.astype(jnp.bfloat16)
    if is_ensemble:
        h1 = jnp.dot(x, params["w1"], preferred_element_type=jnp.float32) + params["b1"][0]
        h2 = jnp.dot(h1.astype(jnp.bfloat16), params["w2"],
                     preferred_element_type=jnp.float32) + params["b2"][0]
        h2 = h2 * jax.nn.sigmoid(h2)
        logits = jnp.dot(h2.astype(jnp.bfloat16), params["w3p"][:, :2],
                         preferred_element_type=jnp.float32)
    else:
        logits = jnp.dot(x, params["wp"][:, :2], preferred_element_type=jnp.float32)
    return {"start_logits": logits[..., 0], "end_logits": logits[..., 1]}


if __name__ == "__main__":
    key = jax.random.PRNGKey(0)
    k_x, k_x2, k_p1, k_p2 = jax.random.split(key, 4)

    B, S, H = 2, 8, 32  # small shapes: batch=2, seq=8, hidden=32
    hidden_states = jax.random.normal(k_x, (B, S, H), dtype=jnp.float32)

    ok = True
    cases = []

    # Both module configurations at the default tile sizes.
    params_e = init_qa_output_params(k_p1, H, True)
    params_s = init_qa_output_params(k_p2, H, False)
    cases.append((hidden_states, params_e, True, {}))
    cases.append((hidden_states, params_s, False, {}))

    # A ragged multi-tile case (M=300 not divisible by tile_m=128) to exercise
    # the cdiv grid + Pallas ragged-tail masking (no explicit padding).
    hidden_states2 = jax.random.normal(k_x2, (3, 100, H), dtype=jnp.float32)
    cases.append((hidden_states2, params_e, True, {"tile_m": 128}))

    for hs, params, is_ensemble, kwargs in cases:
        out = qa_output_forward(hs, params, is_ensemble=is_ensemble, **kwargs)
        jax.block_until_ready(out)
        ref = _qa_output_ref(hs, params, is_ensemble)
        b, s = hs.shape[0], hs.shape[1]
        for name in ("start_logits", "end_logits"):
            if out[name].shape != (b, s):
                ok = False
            if not jnp.allclose(out[name], ref[name], atol=1e-2, rtol=1e-2):
                ok = False

    if ok:
        print("KERNEL_OK")
    else:
        print("KERNEL_MISMATCH")
</pallas_src>

<mosaic_0001>
module attributes {stable_mosaic.version = 11 : i64} {
  func.func @_qa_ensemble_kernel(%arg0: i32, %arg1: memref<128x32xf32, #tpu.memory_space<vmem>>, %arg2: memref<32x32xbf16, #tpu.memory_space<vmem>>, %arg3: memref<1x32xf32, #tpu.memory_space<vmem>>, %arg4: memref<32x16xbf16, #tpu.memory_space<vmem>>, %arg5: memref<1x16xf32, #tpu.memory_space<vmem>>, %arg6: memref<16x8xbf16, #tpu.memory_space<vmem>>, %arg7: memref<128x8xf32, #tpu.memory_space<vmem>>) attributes {dimension_semantics = [#tpu.dimension_semantics<parallel>], iteration_bounds = array<i64: 1>, scalar_prefetch = 0 : i64, scratch_operands = 0 : i64, tpu.core_type = #tpu.core_type<tc>, window_params = [{transform_indices = @transform_0, window_bounds = array<i64: 128, 32>}, {pipeline_mode = #tpu.pipeline_mode<synchronous>, transform_indices = @transform_1, window_bounds = array<i64: 32, 32>}, {pipeline_mode = #tpu.pipeline_mode<synchronous>, transform_indices = @transform_2, window_bounds = array<i64: 1, 32>}, {pipeline_mode = #tpu.pipeline_mode<synchronous>, transform_indices = @transform_3, window_bounds = array<i64: 32, 16>}, {pipeline_mode = #tpu.pipeline_mode<synchronous>, transform_indices = @transform_4, window_bounds = array<i64: 1, 16>}, {pipeline_mode = #tpu.pipeline_mode<synchronous>, transform_indices = @transform_5, window_bounds = array<i64: 16, 8>}, {transform_indices = @transform_6, window_bounds = array<i64: 128, 8>}]} {
    %c0 = arith.constant 0 : index
    %c0_0 = arith.constant 0 : index
    %0 = vector.load %arg1[%c0, %c0_0] : memref<128x32xf32, #tpu.memory_space<vmem>>, vector<128x32xf32>
    %1 = arith.truncf %0 : vector<128x32xf32> to vector<128x32xbf16>
    %c0_1 = arith.constant 0 : index
    %c0_2 = arith.constant 0 : index
    %2 = vector.load %arg2[%c0_1, %c0_2] : memref<32x32xbf16, #tpu.memory_space<vmem>>, vector<32x32xbf16>
    %cst = arith.constant dense<0.000000e+00> : vector<128x32xf32>
    %3 = tpu.matmul %1, %2, %cst {dimension_numbers = #tpu.dot_dimension_numbers<[1], [0], [0], [1], [0, 0, 1, 1], [], []>} : vector<128x32xbf16>, vector<32x32xbf16>, vector<128x32xf32> -> vector<128x32xf32>
    %c0_3 = arith.constant 0 : index
    %c0_4 = arith.constant 0 : index
    %4 = vector.load %arg3[%c0_3, %c0_4] : memref<1x32xf32, #tpu.memory_space<vmem>>, vector<1x32xf32>
    %5 = vector.broadcast %4 : vector<1x32xf32> to vector<128x32xf32>
    %6 = arith.addf %3, %5 : vector<128x32xf32>
    %7 = arith.truncf %6 : vector<128x32xf32> to vector<128x32xbf16>
    %c0_5 = arith.constant 0 : index
    %c0_6 = arith.constant 0 : index
    %8 = vector.load %arg4[%c0_5, %c0_6] : memref<32x16xbf16, #tpu.memory_space<vmem>>, vector<32x16xbf16>
    %cst_7 = arith.constant dense<0.000000e+00> : vector<128x16xf32>
    %9 = tpu.matmul %7, %8, %cst_7 {dimension_numbers = #tpu.dot_dimension_numbers<[1], [0], [0], [1], [0, 0, 1, 1], [], []>} : vector<128x32xbf16>, vector<32x16xbf16>, vector<128x16xf32> -> vector<128x16xf32>
    %c0_8 = arith.constant 0 : index
    %c0_9 = arith.constant 0 : index
    %10 = vector.load %arg5[%c0_8, %c0_9] : memref<1x16xf32, #tpu.memory_space<vmem>>, vector<1x16xf32>
    %11 = vector.broadcast %10 : vector<1x16xf32> to vector<128x16xf32>
    %12 = arith.addf %9, %11 : vector<128x16xf32>
    %13 = arith.negf %12 : vector<128x16xf32>
    %14 = math.exp %13 : vector<128x16xf32>
    %cst_10 = arith.constant 1.000000e+00 : f32
    %15 = vector.broadcast %cst_10 : f32 to vector<128x16xf32>
    %16 = arith.addf %15, %14 : vector<128x16xf32>
    %17 = arith.divf %15, %16 : vector<128x16xf32>
    %18 = arith.mulf %12, %17 : vector<128x16xf32>
    %19 = arith.truncf %18 : vector<128x16xf32> to vector<128x16xbf16>
    %c0_11 = arith.constant 0 : index
    %c0_12 = arith.constant 0 : index
    %20 = vector.load %arg6[%c0_11, %c0_12] : memref<16x8xbf16, #tpu.memory_space<vmem>>, vector<16x8xbf16>
    %cst_13 = arith.constant dense<0.000000e+00> : vector<128x8xf32>
    %21 = tpu.matmul %19, %20, %cst_13 {dimension_numbers = #tpu.dot_dimension_numbers<[1], [0], [0], [1], [0, 0, 1, 1], [], []>} : vector<128x16xbf16>, vector<16x8xbf16>, vector<128x8xf32> -> vector<128x8xf32>
    %c0_14 = arith.constant 0 : index
    %c0_15 = arith.constant 0 : index
    %22 = vector.load %arg7[%c0_14, %c0_15] : memref<128x8xf32, #tpu.memory_space<vmem>>, vector<128x8xf32>
    tpu.vector_store %arg7[%c0_14, %c0_15], %21 {strides = array<i32>} : memref<128x8xf32, #tpu.memory_space<vmem>>, vector<128x8xf32>,
    return
  }
  func.func @transform_0(%arg0: i32) -> (i32, i32) {
    %c0_i32 = arith.constant 0 : i32
    %c0_i32_0 = arith.constant 0 : i32
    return %arg0, %c0_i32 : i32, i32
  }
  func.func @transform_1(%arg0: i32) -> (i32, i32) {
    %c0_i32 = arith.constant 0 : i32
    %c0_i32_0 = arith.constant 0 : i32
    %c0_i32_1 = arith.constant 0 : i32
    return %c0_i32, %c0_i32_0 : i32, i32
  }
  func.func @transform_2(%arg0: i32) -> (i32, i32) {
    %c0_i32 = arith.constant 0 : i32
    %c0_i32_0 = arith.constant 0 : i32
    %c0_i32_1 = arith.constant 0 : i32
    return %c0_i32, %c0_i32_0 : i32, i32
  }
  func.func @transform_3(%arg0: i32) -> (i32, i32) {
    %c0_i32 = arith.constant 0 : i32
    %c0_i32_0 = arith.constant 0 : i32
    %c0_i32_1 = arith.constant 0 : i32
    return %c0_i32, %c0_i32_0 : i32, i32
  }
  func.func @transform_4(%arg0: i32) -> (i32, i32) {
    %c0_i32 = arith.constant 0 : i32
    %c0_i32_0 = arith.constant 0 : i32
    %c0_i32_1 = arith.constant 0 : i32
    return %c0_i32, %c0_i32_0 : i32, i32
  }
  func.func @transform_5(%arg0: i32) -> (i32, i32) {
    %c0_i32 = arith.constant 0 : i32
    %c0_i32_0 = arith.constant 0 : i32
    %c0_i32_1 = arith.constant 0 : i32
    return %c0_i32, %c0_i32_0 : i32, i32
  }
  func.func @transform_6(%arg0: i32) -> (i32, i32) {
    %c0_i32 = arith.constant 0 : i32
    %c0_i32_0 = arith.constant 0 : i32
    return %arg0, %c0_i32 : i32, i32
  }
}

</mosaic_0001>

<llo_original>
// kernel: squeeze.2
$region0: #{squeeze.2}
  %s0 = inlined_call_operand.vmem [shape: f32[16], index: 0, kind: input, shape index: {}]
  %s1 = inlined_call_operand.hbm [shape: f32[2,8], index: 1, kind: output, shape index: {}]
  $region1: #{squeeze.2} parent=0
    #allocation0 [shape = 'u8[1024]{0}', space=vmem, size = 0x400, scoped, tag = 'operand span for operand 1']
    #allocation1 [shape = 's32[1]{0}', space=sflag, size = 0x4, scoped, tag = 'scoped memory for squeeze.2']
    #allocation2 [shape = 'u8[4096]{0}', space=vmem, size = 0x1000, scoped, tag = 'scoped mem for output reshape']
    #allocation3 [shape = 'u8[4096]{0}', space=vmem, size = 0x1000, scoped, tag = 'scoped mem for input reshape']
    %2 = vsyncpa [#allocation1], 0
    %s4 = sshllo.u32 0, 1
    %v5 = vld [vmem:[%s0] sm:%s4]
    %6 = vst [vmem:[#allocation3] sm:%s4] %v5
    %v7 = vld [vmem:[#allocation3] sm:$0x1]
    %vm8 = vcmask 64512
    %9 = vst.msk [vmem:[#allocation2] sm:$0x1] %vm8, %v7
    %v10 = vld [vmem:[#allocation3] sm:$0x1]
    %11 = vrot.lane.b32.xlu0 %v10, 120
    %v12 = vpop.permute.xlu0 %11
    %vm13 = vcmask 64512
    %s14 = scalar_lea.vmem [#allocation2], 1
    %15 = vst.msk [vmem:[%s14] sm:$0x1] %vm13, %v12
    %s17 = sshllo.u32 0, 2
    %v19 = vld [vmem:[#allocation2] sm:%s17]
    %s20 = sshllo.u32 0, 2
    %21 = vst [vmem:[#allocation0] sm:%s20] %v19
    %s23 = ssub.s32 32, 32
    %24 = vsyncadd [#allocation1], %s23
    %s26 = sshll.u32 [#allocation0], 4
    %s27 = int_to_ptr.vmem [resolvable:$true] %s26
    %29 = dma.vmem_to_hbm [thread:$0]  %s27, 32, %s1, [#allocation1]
    %30 = dma.done [#allocation1], 32
    %31 = vsyncpa [#allocation1], 1

// kernel: qa_output_forward.1
$region0: #{qa_output_forward.1}
  #allocation0 [shape = 'u32[]', space=smem, size = 0x4, offset = 0x4, fixed_abs, tag = 'smem constant byte address 0x4 - core index']
  #allocation1 [shape = 'u32[144,128]{1,0:T(1,128)}', space=vmem, size = 0x12000, scoped, tag = 'internal scratch']
  %s0 = inlined_call_operand.vmem [shape: f32[16,32], index: 0, kind: input, shape index: {}]
  %s1 = inlined_call_operand.vmem [shape: bf16[32,32], index: 1, kind: input, shape index: {}]
  %s2 = inlined_call_operand.vmem [shape: f32[1,32], index: 2, kind: input, shape index: {}]
  %s3 = inlined_call_operand.vmem [shape: bf16[32,16], index: 3, kind: input, shape index: {}]
  %s4 = inlined_call_operand.vmem [shape: f32[1,16], index: 4, kind: input, shape index: {}]
  %s5 = inlined_call_operand.vmem [shape: bf16[16,8], index: 5, kind: input, shape index: {}]
  %s6 = inlined_call_operand.vmem [shape: f32[16,8], index: 6, kind: output, shape index: {}]
  %s7 = sld [smem:[#allocation0]]
  $region68: #{qa_output_forward.1} parent=0
    _
  %s9 = ssub.s32 1, %s7
  %s10 = scalar_select 0, %s9, %s7
  $region1: #{qa_output_forward.1} parent=0
    #allocation2 [shape = 'u8[65536]{0}', space=vmem, size = 0x10000, scoped, tag = 'output window, operand 0, single buffered']
    // Predicated region
    $region2: #{qa_output_forward.1} parent=1 // pred_check
      _
    $region3: #{qa_output_forward.1} parent=1 // pred_check_branch
      %12 = sbr.rel (0) target = $region5
    $region4: #{qa_output_forward.1} parent=1 // pred_region
      _
    $region5: #{qa_output_forward.1} parent=1 // pred_fallthru
      _
    // Predicated region
    $region6: #{qa_output_forward.1} parent=1 // pred_check
      _
    $region7: #{qa_output_forward.1} parent=1 // pred_check_branch
      %14 = sbr.rel (0) target = $region9
    $region8: #{qa_output_forward.1} parent=1 // pred_region
      _
    $region9: #{qa_output_forward.1} parent=1 // pred_fallthru
      _
    // Predicated region
    $region10: #{qa_output_forward.1} parent=1 // pred_check
      _
    $region11: #{qa_output_forward.1} parent=1 // pred_check_branch
      %16 = sbr.rel (0) target = $region13
    $region12: #{qa_output_forward.1} parent=1 // pred_region
      _
    $region13: #{qa_output_forward.1} parent=1 // pred_fallthru
      _
    // Predicated region
    $region14: #{qa_output_forward.1} parent=1 // pred_check
      _
    $region15: #{qa_output_forward.1} parent=1 // pred_check_branch
      %18 = sbr.rel (0) target = $region17
    $region16: #{qa_output_forward.1} parent=1 // pred_region
      _
    $region17: #{qa_output_forward.1} parent=1 // pred_fallthru
      _
    // Predicated region
    $region18: #{qa_output_forward.1} parent=1 // pred_check
      _
    $region19: #{qa_output_forward.1} parent=1 // pred_check_branch
      %20 = sbr.rel (0) target = $region21
    $region20: #{qa_output_forward.1} parent=1 // pred_region
      _
    $region21: #{qa_output_forward.1} parent=1 // pred_fallthru
      _
    // Predicated region
    $region22: #{qa_output_forward.1} parent=1 // pred_check
      _
    $region23: #{qa_output_forward.1} parent=1 // pred_check_branch
      %22 = sbr.rel (0) target = $region25
    $region24: #{qa_output_forward.1} parent=1 // pred_region
      _
    $region25: #{qa_output_forward.1} parent=1 // pred_fallthru
      _
    %v24 = vld [vmem:[%s0] sm:$0xff]
    %v25 = vld [vmem:[%s0 + $0x8] sm:$0xff]
    %v26 = vld [vmem:[%s0 + $0x10] sm:$0xff]
    %v27 = vld [vmem:[%s0 + $0x18] sm:$0xff]
    %v28 = vld [vmem:[%s0 + $0x20] sm:$0xff]
    %v29 = vld [vmem:[%s0 + $0x28] sm:$0xff]
    %v30 = vld [vmem:[%s0 + $0x30] sm:$0xff]
    %v31 = vld [vmem:[%s0 + $0x38] sm:$0xff]
    %v32 = vld [vmem:[%s0 + $0x40] sm:$0xff]
    %v33 = vld [vmem:[%s0 + $0x48] sm:$0xff]
    %v34 = vld [vmem:[%s0 + $0x50] sm:$0xff]
    %v35 = vld [vmem:[%s0 + $0x58] sm:$0xff]
    %v36 = vld [vmem:[%s0 + $0x60] sm:$0xff]
    %v37 = vld [vmem:[%s0 + $0x68] sm:$0xff]
    %v38 = vld [vmem:[%s0 + $0x70] sm:$0xff]
    %v39 = vld [vmem:[%s0 + $0x78] sm:$0xff]
    %v40 = vpack.c.bf16 %v25, %v24
    %v41 = vpack.c.bf16 %v27, %v26
    %v42 = vpack.c.bf16 %v29, %v28
    %v43 = vpack.c.bf16 %v31, %v30
    %v44 = vpack.c.bf16 %v33, %v32
    %v45 = vpack.c.bf16 %v35, %v34
    %v46 = vpack.c.bf16 %v37, %v36
    %v47 = vpack.c.bf16 %v39, %v38
    %v48 = vld [vmem:[%s1] sm:$0xf]
    %v49 = vld [vmem:[%s1 + $0x4] sm:$0xf]
    %v50 = vld [vmem:[%s1 + $0x8] sm:$0xf]
    %v51 = vld [vmem:[%s1 + $0xc] sm:$0xf]
    %v52 = vld [vmem:[%s2] sm:$0x1]
    %v54 = vlaneseq
    %v55 = vshrl.u32 %v54, 7
    %v56 = vsub.s32 0, %v55
    %v57 = vrot.slane %v52, %v56
    %v63 = vunpack.c.l.b16 %v48
    %v64 = vunpack.c.l.b16 %v49
    %v65 = vunpack.c.l.b16 %v50
    %v66 = vunpack.c.l.b16 %v51
    %v67 = vpack.c.b16 %v64, %v63
    %v68 = vpack.c.b16 %v66, %v65
    %vm71 = vcmask 261120
    %v73 = vsel %vm71, %v40, 0
    %v76 = vsel %vm71, %v41, 0
    %v79 = vsel %vm71, %v42, 0
    %v82 = vsel %vm71, %v43, 0
    %v85 = vsel %vm71, %v44, 0
    %v88 = vsel %vm71, %v45, 0
    %v91 = vsel %vm71, %v46, 0
    %v94 = vsel %vm71, %v47, 0
    %96 = vmatprep.subr.bf16.mxu0 0
    %97 = vmatpush1.bf16.msra.mxu0 %v67
    %98 = vmatprep.subr.bf16.mxu0 0
    %99 = vmatpush1.bf16.msra.mxu0 %v68
    %100 = vmatprep.subr.bf16.mxu0 0
    %101 = vmatpush1.bf16.msra.mxu0 0
    %102 = vmatprep.subr.bf16.mxu0 0
    %103 = vmatpush1.bf16.msra.mxu0 0
    %104 = vmatprep.subr.bf16.mxu0 0
    %105 = vmatpush1.bf16.msra.mxu0 0
    %106 = vmatprep.subr.bf16.mxu0 0
    %107 = vmatpush1.bf16.msra.mxu0 0
    %108 = vmatprep.subr.bf16.mxu0 0
    %109 = vmatpush1.bf16.msra.mxu0 0
    %110 = vmatprep.subr.bf16.mxu0 0
    %111 = vmatpush1.bf16.msra.mxu0 0
    %112 = vmatprep.subr.bf16.mxu0 0
    %113 = vmatpush1.bf16.msra.mxu0 0
    %114 = vmatprep.subr.bf16.mxu0 0
    %115 = vmatpush1.bf16.msra.mxu0 0
    %116 = vmatprep.subr.bf16.mxu0 0
    %117 = vmatpush1.bf16.msra.mxu0 0
    %118 = vmatprep.subr.bf16.mxu0 0
    %119 = vmatpush1.bf16.msra.mxu0 0
    %120 = vmatprep.subr.bf16.mxu0 0
    %121 = vmatpush1.bf16.msra.mxu0 0
    %122 = vmatprep.subr.bf16.mxu0 0
    %123 = vmatpush1.bf16.msra.mxu0 0
    %124 = vmatprep.subr.bf16.mxu0 0
    %125 = vmatpush1.bf16.msra.mxu0 0
    %126 = vmatprep.subr.bf16.mxu0 0
    %127 = vmatpush1.bf16.msra.mxu0 0
    %128 = vmatprep.mubr.bf16.mxu0 0
    %129 = vmatmul.mubr.bf16.gmra.mrb[0].mxu0 %v73
    %v130 = vpop.f32.mrb[0].mxu0
    %v131 = vadd.f32 %v57, %v130
    %v132 = vpop.f32.mrb[0].mxu0
    %v133 = vpop.f32.mrb[0].mxu0
    %v134 = vadd.f32 %v57, %v133
    %v135 = vpop.f32.mrb[0].mxu0
    %136 = vmatprep.mubr.bf16.mxu0 0
    %137 = vmatmul.mubr.bf16.gmra.mrb[0].mxu0 %v76
    %v138 = vpop.f32.mrb[0].mxu0
    %v139 = vadd.f32 %v57, %v138
    %v140 = vpop.f32.mrb[0].mxu0
    %v141 = vpop.f32.mrb[0].mxu0
    %v142 = vadd.f32 %v57, %v141
    %v143 = vpop.f32.mrb[0].mxu0
    %144 = vmatprep.mubr.bf16.mxu0 0
    %145 = vmatmul.mubr.bf16.gmra.mrb[0].mxu0 %v79
    %v146 = vpop.f32.mrb[0].mxu0
    %v147 = vadd.f32 %v57, %v146
    %v148 = vpop.f32.mrb[0].mxu0
    %v149 = vpop.f32.mrb[0].mxu0
    %v150 = vadd.f32 %v57, %v149
    %v151 = vpop.f32.mrb[0].mxu0
    %152 = vmatprep.mubr.bf16.mxu0 0
    %153 = vmatmul.mubr.bf16.gmra.mrb[0].mxu0 %v82
    %v154 = vpop.f32.mrb[0].mxu0
    %v155 = vadd.f32 %v57, %v154
    %v156 = vpop.f32.mrb[0].mxu0
    %v157 = vpop.f32.mrb[0].mxu0
    %v158 = vadd.f32 %v57, %v157
    %v159 = vpop.f32.mrb[0].mxu0
    %160 = vmatprep.mubr.bf16.mxu0 0
    %161 = vmatmul.mubr.bf16.gmra.mrb[0].mxu0 %v85
    %v162 = vpop.f32.mrb[0].mxu0
    %v163 = vadd.f32 %v57, %v162
    %v164 = vpop.f32.mrb[0].mxu0
    %v165 = vpop.f32.mrb[0].mxu0
    %v166 = vadd.f32 %v57, %v165
    %v167 = vpop.f32.mrb[0].mxu0
    %168 = vmatprep.mubr.bf16.mxu0 0
    %169 = vmatmul.mubr.bf16.gmra.mrb[0].mxu0 %v88
    %v170 = vpop.f32.mrb[0].mxu0
    %v171 = vadd.f32 %v57, %v170
    %v172 = vpop.f32.mrb[0].mxu0
    %v173 = vpop.f32.mrb[0].mxu0
    %v174 = vadd.f32 %v57, %v173
    %v175 = vpop.f32.mrb[0].mxu0
    %176 = vmatprep.mubr.bf16.mxu0 0
    %177 = vmatmul.mubr.bf16.gmra.mrb[0].mxu0 %v91
    %v178 = vpop.f32.mrb[0].mxu0
    %v179 = vadd.f32 %v57, %v178
    %v180 = vpop.f32.mrb[0].mxu0
    %v181 = vpop.f32.mrb[0].mxu0
    %v182 = vadd.f32 %v57, %v181
    %v183 = vpop.f32.mrb[0].mxu0
    %184 = vmatprep.mubr.bf16.mxu0 0
    %185 = vmatmul.mubr.bf16.gmra.mrb[0].mxu0 %v94
    %v186 = vpop.f32.mrb[0].mxu0
    %v187 = vadd.f32 %v57, %v186
    %v188 = vpop.f32.mrb[0].mxu0
    %v189 = vpop.f32.mrb[0].mxu0
    %v190 = vadd.f32 %v57, %v189
    %v191 = vpop.f32.mrb[0].mxu0
    %192 = vdwg.mxu0
    %v193 = vpack.c.bf16 %v134, %v131
    %v194 = vpack.c.bf16 %v142, %v139
    %v195 = vpack.c.bf16 %v150, %v147
    %v196 = vpack.c.bf16 %v158, %v155
    %v197 = vpack.c.bf16 %v166, %v163
    %v198 = vpack.c.bf16 %v174, %v171
    %v199 = vpack.c.bf16 %v182, %v179
    %v200 = vpack.c.bf16 %v190, %v187
    %v201 = vld [vmem:[%s3] sm:$0xf]
    %v202 = vld [vmem:[%s3 + $0x4] sm:$0xf]
    %v203 = vld [vmem:[%s3 + $0x8] sm:$0xf]
    %v204 = vld [vmem:[%s3 + $0xc] sm:$0xf]
    %v205 = vld [vmem:[%s4] sm:$0x1]
    %v207 = vlaneseq
    %v208 = vshrl.u32 %v207, 7
    %v209 = vsub.s32 0, %v208
    %v210 = vrot.slane %v205, %v209
    %v216 = vunpack.c.l.b16 %v201
    %v217 = vunpack.c.l.b16 %v202
    %v218 = vunpack.c.l.b16 %v203
    %v219 = vunpack.c.l.b16 %v204
    %v220 = vpack.c.b16 %v217, %v216
    %v221 = vpack.c.b16 %v219, %v218
    %v225 = vsel %vm71, %v193, 0
    %v228 = vsel %vm71, %v194, 0
    %v231 = vsel %vm71, %v195, 0
    %v234 = vsel %vm71, %v196, 0
    %v237 = vsel %vm71, %v197, 0
    %v240 = vsel %vm71, %v198, 0
    %v243 = vsel %vm71, %v199, 0
    %v246 = vsel %vm71, %v200, 0
    %248 = vmatprep.subr.bf16.mxu0 0
    %249 = vmatpush1.bf16.msra.mxu0 %v220
    %250 = vmatprep.subr.bf16.mxu0 0
    %251 = vmatpush1.bf16.msra.mxu0 %v221
    %252 = vmatprep.subr.bf16.mxu0 0
    %253 = vmatpush1.bf16.msra.mxu0 0
    %254 = vmatprep.subr.bf16.mxu0 0
    %255 = vmatpush1.bf16.msra.mxu0 0
    %256 = vmatprep.subr.bf16.mxu0 0
    %257 = vmatpush1.bf16.msra.mxu0 0
    %258 = vmatprep.subr.bf16.mxu0 0
    %259 = vmatpush1.bf16.msra.mxu0 0
    %260 = vmatprep.subr.bf16.mxu0 0
    %261 = vmatpush1.bf16.msra.mxu0 0
    %262 = vmatprep.subr.bf16.mxu0 0
    %263 = vmatpush1.bf16.msra.mxu0 0
    %264 = vmatprep.subr.bf16.mxu0 0
    %265 = vmatpush1.bf16.msra.mxu0 0
    %266 = vmatprep.subr.bf16.mxu0 0
    %267 = vmatpush1.bf16.msra.mxu0 0
    %268 = vmatprep.subr.bf16.mxu0 0
    %269 = vmatpush1.bf16.msra.mxu0 0
    %270 = vmatprep.subr.bf16.mxu0 0
    %271 = vmatpush1.bf16.msra.mxu0 0
    %272 = vmatprep.subr.bf16.mxu0 0
    %273 = vmatpush1.bf16.msra.mxu0 0
    %274 = vmatprep.subr.bf16.mxu0 0
    %275 = vmatpush1.bf16.msra.mxu0 0
    %276 = vmatprep.subr.bf16.mxu0 0
    %277 = vmatpush1.bf16.msra.mxu0 0
    %278 = vmatprep.subr.bf16.mxu0 0
    %279 = vmatpush1.bf16.msra.mxu0 0
    %280 = vmatprep.mubr.bf16.mxu0 0
    %281 = vmatmul.mubr.bf16.gmra.mrb[0].mxu0 %v225
    %v282 = vpop.f32.mrb[0].mxu0
    %v283 = vadd.f32 %v210, %v282
    %v284 = vpop.f32.mrb[0].mxu0
    %v285 = vpop.f32.mrb[0].mxu0
    %v286 = vadd.f32 %v210, %v285
    %v287 = vpop.f32.mrb[0].mxu0
    %288 = vmatprep.mubr.bf16.mxu0 0
    %289 = vmatmul.mubr.bf16.gmra.mrb[0].mxu0 %v228
    %v290 = vpop.f32.mrb[0].mxu0
    %v291 = vadd.f32 %v210, %v290
    %v292 = vpop.f32.mrb[0].mxu0
    %v293 = vpop.f32.mrb[0].mxu0
    %v294 = vadd.f32 %v210, %v293
    %v295 = vpop.f32.mrb[0].mxu0
    %296 = vmatprep.mubr.bf16.mxu0 0
    %297 = vmatmul.mubr.bf16.gmra.mrb[0].mxu0 %v231
    %v298 = vpop.f32.mrb[0].mxu0
    %v299 = vadd.f32 %v210, %v298
    %v300 = vpop.f32.mrb[0].mxu0
    %v301 = vpop.f32.mrb[0].mxu0
    %v302 = vadd.f32 %v210, %v301
    %v303 = vpop.f32.mrb[0].mxu0
    %304 = vmatprep.mubr.bf16.mxu0 0
    %305 = vmatmul.mubr.bf16.gmra.mrb[0].mxu0 %v234
    %v306 = vpop.f32.mrb[0].mxu0
    %v307 = vadd.f32 %v210, %v306
    %v308 = vpop.f32.mrb[0].mxu0
    %v309 = vpop.f32.mrb[0].mxu0
    %v310 = vadd.f32 %v210, %v309
    %v311 = vpop.f32.mrb[0].mxu0
    %312 = vmatprep.mubr.bf16.mxu0 0
    %313 = vmatmul.mubr.bf16.gmra.mrb[0].mxu0 %v237
    %v314 = vpop.f32.mrb[0].mxu0
    %v315 = vadd.f32 %v210, %v314
    %v316 = vpop.f32.mrb[0].mxu0
    %v317 = vpop.f32.mrb[0].mxu0
    %v318 = vadd.f32 %v210, %v317
    %v319 = vpop.f32.mrb[0].mxu0
    %320 = vmatprep.mubr.bf16.mxu0 0
    %321 = vmatmul.mubr.bf16.gmra.mrb[0].mxu0 %v240
    %v322 = vpop.f32.mrb[0].mxu0
    %v323 = vadd.f32 %v210, %v322
    %v324 = vpop.f32.mrb[0].mxu0
    %v325 = vpop.f32.mrb[0].mxu0
    %v326 = vadd.f32 %v210, %v325
    %v327 = vpop.f32.mrb[0].mxu0
    %328 = vmatprep.mubr.bf16.mxu0 0
    %329 = vmatmul.mubr.bf16.gmra.mrb[0].mxu0 %v243
    %v330 = vpop.f32.mrb[0].mxu0
    %v331 = vadd.f32 %v210, %v330
    %v332 = vpop.f32.mrb[0].mxu0
    %v333 = vpop.f32.mrb[0].mxu0
    %v334 = vadd.f32 %v210, %v333
    %v335 = vpop.f32.mrb[0].mxu0
    %336 = vmatprep.mubr.bf16.mxu0 0
    %337 = vmatmul.mubr.bf16.gmra.mrb[0].mxu0 %v246
    %v338 = vpop.f32.mrb[0].mxu0
    %v339 = vadd.f32 %v210, %v338
    %v340 = vpop.f32.mrb[0].mxu0
    %v341 = vpop.f32.mrb[0].mxu0
    %v342 = vadd.f32 %v210, %v341
    %v343 = vpop.f32.mrb[0].mxu0
    %344 = vdwg.mxu0
    %v345 = vxor.u32 %v283, 2147483648
    %v346 = vxor.u32 %v286, 2147483648
    %v347 = vxor.u32 %v291, 2147483648
    %v348 = vxor.u32 %v294, 2147483648
    %v349 = vxor.u32 %v299, 2147483648
    %v350 = vxor.u32 %v302, 2147483648
    %v351 = vxor.u32 %v307, 2147483648
    %v352 = vxor.u32 %v310, 2147483648
    %v353 = vxor.u32 %v315, 2147483648
    %v354 = vxor.u32 %v318, 2147483648
    %v355 = vxor.u32 %v323, 2147483648
    %v356 = vxor.u32 %v326, 2147483648
    %v357 = vxor.u32 %v331, 2147483648
    %v358 = vxor.u32 %v334, 2147483648
    %v359 = vxor.u32 %v339, 2147483648
    %v360 = vxor.u32 %v342, 2147483648
    %v361 = vmul.f32 %v345, 1.442695
    %v362 = vpow.pop %v361
    %v363 = vmul.f32 %v346, 1.442695
    %v364 = vpow.pop %v363
    %v365 = vmul.f32 %v347, 1.442695
    %v366 = vpow.pop %v365
    %v367 = vmul.f32 %v348, 1.442695
    %v368 = vpow.pop %v367
    %v369 = vmul.f32 %v349, 1.442695
    %v370 = vpow.pop %v369
    %v371 = vmul.f32 %v350, 1.442695
    %v372 = vpow.pop %v371
    %v373 = vmul.f32 %v351, 1.442695
    %v374 = vpow.pop %v373
    %v375 = vmul.f32 %v352, 1.442695
    %v376 = vpow.pop %v375
    %v377 = vmul.f32 %v353, 1.442695
    %v378 = vpow.pop %v377
    %v379 = vmul.f32 %v354, 1.442695
    %v380 = vpow.pop %v379
    %v381 = vmul.f32 %v355, 1.442695
    %v382 = vpow.pop %v381
    %v383 = vmul.f32 %v356, 1.442695
    %v384 = vpow.pop %v383
    %v385 = vmul.f32 %v357, 1.442695
    %v386 = vpow.pop %v385
    %v387 = vmul.f32 %v358, 1.442695
    %v388 = vpow.pop %v387
    %v389 = vmul.f32 %v359, 1.442695
    %v390 = vpow.pop %v389
    %v391 = vmul.f32 %v360, 1.442695
    %v392 = vpow.pop %v391
    %v393 = vadd.f32 %v362, 1.0
    %v394 = vadd.f32 %v364, 1.0
    %v395 = vadd.f32 %v366, 1.0
    %v396 = vadd.f32 %v368, 1.0
    %v397 = vadd.f32 %v370, 1.0
    %v398 = vadd.f32 %v372, 1.0
    %v399 = vadd.f32 %v374, 1.0
    %v400 = vadd.f32 %v376, 1.0
    %v401 = vadd.f32 %v378, 1.0
    %v402 = vadd.f32 %v380, 1.0
    %v403 = vadd.f32 %v382, 1.0
    %v404 = vadd.f32 %v384, 1.0
    %v405 = vadd.f32 %v386, 1.0
    %v406 = vadd.f32 %v388, 1.0
    %v407 = vadd.f32 %v390, 1.0
    %v408 = vadd.f32 %v392, 1.0
    %v409 = vrcp.pop %v393
    %v410 = vmul.f32 1.0, %v409
    %v411 = vrcp.pop %v394
    %v412 = vmul.f32 1.0, %v411
    %v413 = vrcp.pop %v395
    %v414 = vmul.f32 1.0, %v413
    %v415 = vrcp.pop %v396
    %v416 = vmul.f32 1.0, %v415
    %v417 = vrcp.pop %v397
    %v418 = vmul.f32 1.0, %v417
    %v419 = vrcp.pop %v398
    %v420 = vmul.f32 1.0, %v419
    %v421 = vrcp.pop %v399
    %v422 = vmul.f32 1.0, %v421
    %v423 = vrcp.pop %v400
    %v424 = vmul.f32 1.0, %v423
    %v425 = vrcp.pop %v401
    %v426 = vmul.f32 1.0, %v425
    %v427 = vrcp.pop %v402
    %v428 = vmul.f32 1.0, %v427
    %v429 = vrcp.pop %v403
    %v430 = vmul.f32 1.0, %v429
    %v431 = vrcp.pop %v404
    %v432 = vmul.f32 1.0, %v431
    %v433 = vrcp.pop %v405
    %v434 = vmul.f32 1.0, %v433
    %v435 = vrcp.pop %v406
    %v436 = vmul.f32 1.0, %v435
    %v437 = vrcp.pop %v407
    %v438 = vmul.f32 1.0, %v437
    %v439 = vrcp.pop %v408
    %v440 = vmul.f32 1.0, %v439
    %v441 = vmul.f32 %v283, %v410
    %v442 = vmul.f32 %v286, %v412
    %v443 = vmul.f32 %v291, %v414
    %v444 = vmul.f32 %v294, %v416
    %v445 = vmul.f32 %v299, %v418
    %v446 = vmul.f32 %v302, %v420
    %v447 = vmul.f32 %v307, %v422
    %v448 = vmul.f32 %v310, %v424
    %v449 = vmul.f32 %v315, %v426
    %v450 = vmul.f32 %v318, %v428
    %v451 = vmul.f32 %v323, %v430
    %v452 = vmul.f32 %v326, %v432
    %v453 = vmul.f32 %v331, %v434
    %v454 = vmul.f32 %v334, %v436
    %v455 = vmul.f32 %v339, %v438
    %v456 = vmul.f32 %v342, %v440
    %v457 = vpack.c.bf16 %v442, %v441
    %v458 = vpack.c.bf16 %v444, %v443
    %v459 = vpack.c.bf16 %v446, %v445
    %v460 = vpack.c.bf16 %v448, %v447
    %v461 = vpack.c.bf16 %v450, %v449
    %v462 = vpack.c.bf16 %v452, %v451
    %v463 = vpack.c.bf16 %v454, %v453
    %v464 = vpack.c.bf16 %v456, %v455
    %v465 = vld [vmem:[%s5] sm:$0xf]
    %v466 = vld [vmem:[%s5 + $0x4] sm:$0xf]
    %v469 = vunpack.c.l.b16 %v465
    %v470 = vunpack.c.l.b16 %v466
    %v471 = vpack.c.b16 %v470, %v469
    %vm473 = vcmask 130048
    %v475 = vsel %vm473, %v457, 0
    %v478 = vsel %vm473, %v458, 0
    %v481 = vsel %vm473, %v459, 0
    %v484 = vsel %vm473, %v460, 0
    %v487 = vsel %vm473, %v461, 0
    %v490 = vsel %vm473, %v462, 0
    %v493 = vsel %vm473, %v463, 0
    %v496 = vsel %vm473, %v464, 0
    %498 = vmatprep.subr.bf16.mxu0 0
    %499 = vmatpush1.bf16.msra.mxu0 %v471
    %500 = vmatprep.subr.bf16.mxu0 0
    %501 = vmatpush1.bf16.msra.mxu0 0
    %502 = vmatprep.subr.bf16.mxu0 0
    %503 = vmatpush1.bf16.msra.mxu0 0
    %504 = vmatprep.subr.bf16.mxu0 0
    %505 = vmatpush1.bf16.msra.mxu0 0
    %506 = vmatprep.subr.bf16.mxu0 0
    %507 = vmatpush1.bf16.msra.mxu0 0
    %508 = vmatprep.subr.bf16.mxu0 0
    %509 = vmatpush1.bf16.msra.mxu0 0
    %510 = vmatprep.subr.bf16.mxu0 0
    %511 = vmatpush1.bf16.msra.mxu0 0
    %512 = vmatprep.subr.bf16.mxu0 0
    %513 = vmatpush1.bf16.msra.mxu0 0
    %514 = vmatprep.subr.bf16.mxu0 0
    %515 = vmatpush1.bf16.msra.mxu0 0
    %516 = vmatprep.subr.bf16.mxu0 0
    %517 = vmatpush1.bf16.msra.mxu0 0
    %518 = vmatprep.subr.bf16.mxu0 0
    %519 = vmatpush1.bf16.msra.mxu0 0
    %520 = vmatprep.subr.bf16.mxu0 0
    %521 = vmatpush1.bf16.msra.mxu0 0
    %522 = vmatprep.subr.bf16.mxu0 0
    %523 = vmatpush1.bf16.msra.mxu0 0
    %524 = vmatprep.subr.bf16.mxu0 0
    %525 = vmatpush1.bf16.msra.mxu0 0
    %526 = vmatprep.subr.bf16.mxu0 0
    %527 = vmatpush1.bf16.msra.mxu0 0
    %528 = vmatprep.subr.bf16.mxu0 0
    %529 = vmatpush1.bf16.msra.mxu0 0
    %530 = vmatprep.mubr.bf16.mxu0 0
    %531 = vmatmul.mubr.bf16.gmra.mrb[0].mxu0 %v475
    %v532 = vpop.f32.mrb[0].mxu0
    %v533 = vadd.f32 0.0, %v532
    %v534 = vpop.f32.mrb[0].mxu0
    %v535 = vpop.f32.mrb[0].mxu0
    %v536 = vadd.f32 0.0, %v535
    %v537 = vpop.f32.mrb[0].mxu0
    %538 = vmatprep.mubr.bf16.mxu0 0
    %539 = vmatmul.mubr.bf16.gmra.mrb[0].mxu0 %v478
    %v540 = vpop.f32.mrb[0].mxu0
    %v541 = vadd.f32 0.0, %v540
    %v542 = vpop.f32.mrb[0].mxu0
    %v543 = vpop.f32.mrb[0].mxu0
    %v544 = vadd.f32 0.0, %v543
    %v545 = vpop.f32.mrb[0].mxu0
    %546 = vmatprep.mubr.bf16.mxu0 0
    %547 = vmatmul.mubr.bf16.gmra.mrb[0].mxu0 %v481
    %v548 = vpop.f32.mrb[0].mxu0
    %v549 = vadd.f32 0.0, %v548
    %v550 = vpop.f32.mrb[0].mxu0
    %v551 = vpop.f32.mrb[0].mxu0
    %v552 = vadd.f32 0.0, %v551
    %v553 = vpop.f32.mrb[0].mxu0
    %554 = vmatprep.mubr.bf16.mxu0 0
    %555 = vmatmul.mubr.bf16.gmra.mrb[0].mxu0 %v484
    %v556 = vpop.f32.mrb[0].mxu0
    %v557 = vadd.f32 0.0, %v556
    %v558 = vpop.f32.mrb[0].mxu0
    %v559 = vpop.f32.mrb[0].mxu0
    %v560 = vadd.f32 0.0, %v559
    %v561 = vpop.f32.mrb[0].mxu0
    %562 = vmatprep.mubr.bf16.mxu0 0
    %563 = vmatmul.mubr.bf16.gmra.mrb[0].mxu0 %v487
    %v564 = vpop.f32.mrb[0].mxu0
    %v565 = vadd.f32 0.0, %v564
    %v566 = vpop.f32.mrb[0].mxu0
    %v567 = vpop.f32.mrb[0].mxu0
    %v568 = vadd.f32 0.0, %v567
    %v569 = vpop.f32.mrb[0].mxu0
    %570 = vmatprep.mubr.bf16.mxu0 0
    %571 = vmatmul.mubr.bf16.gmra.mrb[0].mxu0 %v490
    %v572 = vpop.f32.mrb[0].mxu0
    %v573 = vadd.f32 0.0, %v572
    %v574 = vpop.f32.mrb[0].mxu0
    %v575 = vpop.f32.mrb[0].mxu0
    %v576 = vadd.f32 0.0, %v575
    %v577 = vpop.f32.mrb[0].mxu0
    %578 = vmatprep.mubr.bf16.mxu0 0
    %579 = vmatmul.mubr.bf16.gmra.mrb[0].mxu0 %v493
    %v580 = vpop.f32.mrb[0].mxu0
    %v581 = vadd.f32 0.0, %v580
    %v582 = vpop.f32.mrb[0].mxu0
    %v583 = vpop.f32.mrb[0].mxu0
    %v584 = vadd.f32 0.0, %v583
    %v585 = vpop.f32.mrb[0].mxu0
    %586 = vmatprep.mubr.bf16.mxu0 0
    %587 = vmatmul.mubr.bf16.gmra.mrb[0].mxu0 %v496
    %v588 = vpop.f32.mrb[0].mxu0
    %v589 = vadd.f32 0.0, %v588
    %v590 = vpop.f32.mrb[0].mxu0
    %v591 = vpop.f32.mrb[0].mxu0
    %v592 = vadd.f32 0.0, %v591
    %v593 = vpop.f32.mrb[0].mxu0
    %594 = vdwg.mxu0
    %vm595 = vcmask 64512
    %596 = vst.msk [vmem:[#allocation2] sm:$0xff] %vm595, %v533
    %597 = vst.msk [vmem:[#allocation2 + $0x8] sm:$0xff] %vm595, %v536
    %598 = vst.msk [vmem:[#allocation2 + $0x10] sm:$0xff] %vm595, %v541
    %599 = vst.msk [vmem:[#allocation2 + $0x18] sm:$0xff] %vm595, %v544
    %600 = vst.msk [vmem:[#allocation2 + $0x20] sm:$0xff] %vm595, %v549
    %601 = vst.msk [vmem:[#allocation2 + $0x28] sm:$0xff] %vm595, %v552
    %602 = vst.msk [vmem:[#allocation2 + $0x30] sm:$0xff] %vm595, %v557
    %603 = vst.msk [vmem:[#allocation2 + $0x38] sm:$0xff] %vm595, %v560
    %604 = vst.msk [vmem:[#allocation2 + $0x40] sm:$0xff] %vm595, %v565
    %605 = vst.msk [vmem:[#allocation2 + $0x48] sm:$0xff] %vm595, %v568
    %606 = vst.msk [vmem:[#allocation2 + $0x50] sm:$0xff] %vm595, %v573
    %607 = vst.msk [vmem:[#allocation2 + $0x58] sm:$0xff] %vm595, %v576
    %608 = vst.msk [vmem:[#allocation2 + $0x60] sm:$0xff] %vm595, %v581
    %609 = vst.msk [vmem:[#allocation2 + $0x68] sm:$0xff] %vm595, %v584
    %610 = vst.msk [vmem:[#allocation2 + $0x70] sm:$0xff] %vm595, %v589
    %611 = vst.msk [vmem:[#allocation2 + $0x78] sm:$0xff] %vm595, %v592
    // Predicated region
    $region26: #{qa_output_forward.1} parent=1 // pred_check
      _
    $region27: #{qa_output_forward.1} parent=1 // pred_check_branch
      %613 = sbr.rel (0) target = $region29
    $region28: #{qa_output_forward.1} parent=1 // pred_region
      // Predicated region
      $region30: #{qa_output_forward.1} parent=28 // pred_check
        _
      $region31: #{qa_output_forward.1} parent=28 // pred_check_branch
        %615 = sbr.rel (0) target = $region33
      $region32: #{qa_output_forward.1} parent=28 // pred_region
        // Predicated region
        $region34: #{qa_output_forward.1} parent=32 // pred_check
          _
        $region35: #{qa_output_forward.1} parent=32 // pred_check_branch
          %617 = sbr.rel (0) target = $region37
        $region36: #{qa_output_forward.1} parent=32 // pred_region
          // Predicated region
          $region49: #{qa_output_forward.1} parent=36 // pred_check
            _
          $region50: #{qa_output_forward.1} parent=36 // pred_check_branch
            %634 = sbr.rel (0) target = $region52
          $region51: #{qa_output_forward.1} parent=36 // pred_region
            loop: start=0, step=1, limit=1
            $region53: #{qa_output_forward.1} parent=51 // loop_pre_header
              _
            $region54: #{qa_output_forward.1} parent=51 // loop_header
              %s636 = sphi 0, %s640
              %p637 = scmp.ge.s32.totalorder %s636, 1
              %s641 = sphi [#allocation2], [#allocation2]
              %s642 = sphi %s6, %s6
            $region55: #{qa_output_forward.1} parent=51 // loop_header_branch
              %639 = sbr.rel (%p637) target = $region59
            $region56: #{qa_output_forward.1} parent=51 // loop_body
              %v643 = vld [vmem:[%s641] sm:$0xff]
              %644 = vst [vmem:[%s642] sm:$0xff] %v643
              %v645 = vld [vmem:[%s641 + $0x8] sm:$0xff]
              %646 = vst [vmem:[%s642 + $0x8] sm:$0xff] %v645
            $region57: #{qa_output_forward.1} parent=51 // loop_footer
              %s640 = sadd.s32 1, %s636
            $region58: #{qa_output_forward.1} parent=51 // loop_footer_branch
              %635 = sbr.rel target = $region54
            $region59: #{qa_output_forward.1} parent=51 // loop_exit
              _
          $region52: #{qa_output_forward.1} parent=36 // pred_fallthru
            _
          // Predicated region
          $region60: #{qa_output_forward.1} parent=36 // pred_check
            _
          $region61: #{qa_output_forward.1} parent=36 // pred_check_branch
            %648 = sbr.rel target = $region63
          $region62: #{qa_output_forward.1} parent=36 // pred_region
            _
          $region63: #{qa_output_forward.1} parent=36 // pred_fallthru
            _
        $region37: #{qa_output_forward.1} parent=32 // pred_fallthru
          _
        // Predicated region
        $region38: #{qa_output_forward.1} parent=32 // pred_check
          _
        $region39: #{qa_output_forward.1} parent=32 // pred_check_branch
          %619 = sbr.rel target = $region41
        $region40: #{qa_output_forward.1} parent=32 // pred_region
          loop: start=0, step=1, limit=1
          $region42: #{qa_output_forward.1} parent=40 // loop_pre_header
            _
          $region43: #{qa_output_forward.1} parent=40 // loop_header
            %s622 = sphi 0, %s626
            %p623 = scmp.ge.s32.totalorder %s622, 1
            %s627 = sphi [#allocation2], [#allocation2]
            %s628 = sphi %s6, %s6
          $region44: #{qa_output_forward.1} parent=40 // loop_header_branch
            %625 = sbr.rel (%p623) target = $region48
          $region45: #{qa_output_forward.1} parent=40 // loop_body
            %v629 = vld [vmem:[%s627] sm:$0xff]
            %630 = vst [vmem:[%s628] sm:$0xff] %v629
            %v631 = vld [vmem:[%s627 + $0x8] sm:$0xff]
            %632 = vst [vmem:[%s628 + $0x8] sm:$0xff] %v631
          $region46: #{qa_output_forward.1} parent=40 // loop_footer
            %s626 = sadd.s32 1, %s622
          $region47: #{qa_output_forward.1} parent=40 // loop_footer_branch
            %621 = sbr.rel target = $region43
          $region48: #{qa_output_forward.1} parent=40 // loop_exit
            _
        $region41: #{qa_output_forward.1} parent=32 // pred_fallthru
          _
      $region33: #{qa_output_forward.1} parent=28 // pred_fallthru
        _
      %649 = vnop
    $region29: #{qa_output_forward.1} parent=1 // pred_fallthru
      _
    // Predicated region
    $region64: #{qa_output_forward.1} parent=1 // pred_check
      _
    $region65: #{qa_output_forward.1} parent=1 // pred_check_branch
      %651 = sbr.rel (0) target = $region67
    $region66: #{qa_output_forward.1} parent=1 // pred_region
      _
    $region67: #{qa_output_forward.1} parent=1 // pred_fallthru
      _

</llo_original>
